<compile_context>
chip_gen: v7x
topology: tpu7x:2x2x1
jax: 0.10.0
libtpu: 0.0.40
codegen_flags: <defaults>
</compile_context>

<pallas_src>
from functools import partial

import jax
import jax.numpy as jnp
from jax import lax
from jax.experimental import pallas as pl
from jax.experimental.pallas import tpu as pltpu


def _accuracy_tile_kernel(pred_ref, label_ref, out_ref, *, tile_n, n_total):
    """One (TN, C) tile of each input -> int32 partial match count."""
    # TODO(synk): rows containing NaN tie-break differently from torch.argmax
    # (edge case); huge int inputs lose precision through the f32 cast.
    p = pred_ref[...].astype(jnp.float32)    # (TN, C)
    l = label_ref[...].astype(jnp.float32)   # (TN, C)
    tn, c = p.shape

    # argmax along the last (lane) axis with first-occurrence tie-break:
    #   max -> compare -> smallest column index where equal to max.
    col = lax.broadcasted_iota(jnp.int32, (tn, c), 1)

    p_max = jnp.max(p, axis=-1, keepdims=True)
    p_arg = jnp.min(jnp.where(p == p_max, col, jnp.int32(c)),
                    axis=-1, keepdims=True)          # (TN, 1) int32

    l_max = jnp.max(l, axis=-1, keepdims=True)
    l_arg = jnp.min(jnp.where(l == l_max, col, jnp.int32(c)),
                    axis=-1, keepdims=True)          # (TN, 1) int32

    # Mask rows that fall past the true N (ragged last block: padded rows
    # hold unspecified data and must not contribute).
    row = lax.broadcasted_iota(jnp.int32, (tn, 1), 0)
    global_row = pl.program_id(0) * tile_n + row
    valid = global_row < n_total

    match = jnp.where(valid & (p_arg == l_arg),
                      jnp.int32(1), jnp.int32(0))    # (TN, 1)
    cnt = jnp.sum(match)                             # exact integer count

    # Lane-dense (1, 8, 128) partial block; broadcast the scalar count so the
    # store is a full unmasked vst.
    out_ref[...] = jnp.full(out_ref.shape, cnt, dtype=jnp.int32)


def _choose_tile_n(n, c, itemsize):
    # Budget ~16 MiB for 2 inputs x 2 pipeline buffers of (TN, C) tiles:
    # safe under v7x's smaller VMEM, big enough to amortize per-grid-step
    # overhead on v5e/v6e.
    budget = 16 * 1024 * 1024
    per_row = 2 * 2 * c * itemsize
    tn = budget // max(per_row, 1)
    tn = max(8, min(1024, int(tn)))
    tn = (tn // 8) * 8
    n_pad = ((n + 7) // 8) * 8
    return max(8, min(tn, n_pad))


def accuracy(prediction, label):
    """Pallas implementation of Accuracy.forward(prediction, label)."""
    c = prediction.shape[-1]
    pred2d = prediction.reshape(-1, c)   # keep native dtype (no HBM upcast)
    lab2d = label.reshape(-1, c)
    n = pred2d.shape[0]

    itemsize = max(jnp.dtype(pred2d.dtype).itemsize,
                   jnp.dtype(lab2d.dtype).itemsize)
    tile_n = _choose_tile_n(n, c, itemsize)
    num_tiles = (n + tile_n - 1) // tile_n

    kernel = partial(_accuracy_tile_kernel, tile_n=tile_n, n_total=n)

    partials = pl.pallas_call(
        kernel,
        out_shape=jax.ShapeDtypeStruct((num_tiles, 8, 128), jnp.int32),
        grid=(num_tiles,),
        in_specs=[
            pl.BlockSpec((tile_n, c), lambda i: (i, 0)),
            pl.BlockSpec((tile_n, c), lambda i: (i, 0)),
        ],
        out_specs=pl.BlockSpec((1, 8, 128), lambda i: (i, 0, 0)),
        compiler_params=pltpu.CompilerParams(
            dimension_semantics=("parallel",),
            vmem_limit_bytes=48 * 1024 * 1024,
        ),
    )(pred2d, lab2d)

    total = jnp.sum(partials[:, 0, 0])               # exact int32 total
    return total.astype(jnp.float32) / jnp.float32(n)


if __name__ == "__main__":
    key = jax.random.PRNGKey(0)
    kp, kl, kp2, kl2 = jax.random.split(key, 4)

    # Case 1: small f32 batch, 8 samples x 32 classes.
    prediction = jax.random.normal(kp, (8, 32), dtype=jnp.float32)
    label = jax.random.normal(kl, (8, 32), dtype=jnp.float32)

    acc = jax.block_until_ready(accuracy(prediction, label))
    ref = jnp.mean(
        (jnp.argmax(prediction, axis=-1) == jnp.argmax(label, axis=-1))
        .astype(jnp.float32)
    )
    assert jnp.allclose(acc, ref), (acc, ref)

    # Case 2: leading batch dims + ragged N (exercises flatten + padding mask),
    # bf16 inputs streamed in native dtype.
    prediction2 = jax.random.normal(kp2, (3, 5, 40), dtype=jnp.bfloat16)
    label2 = jax.random.normal(kl2, (3, 5, 40), dtype=jnp.bfloat16)

    acc2 = jax.block_until_ready(accuracy(prediction2, label2))
    ref2 = jnp.mean(
        (jnp.argmax(prediction2, axis=-1) == jnp.argmax(label2, axis=-1))
        .astype(jnp.float32)
    )
    assert jnp.allclose(acc2, ref2), (acc2, ref2)

    print("KERNEL_OK")
</pallas_src>

<mosaic_0001>
module attributes {stable_mosaic.version = 11 : i64} {
  func.func @_accuracy_tile_kernel(%arg0: i32, %arg1: memref<8x32xf32, #tpu.memory_space<vmem>>, %arg2: memref<8x32xf32, #tpu.memory_space<vmem>>, %arg3: memref<1x8x128xi32, #tpu.memory_space<vmem>>) attributes {dimension_semantics = [#tpu.dimension_semantics<parallel>], iteration_bounds = array<i64: 1>, scalar_prefetch = 0 : i64, scratch_operands = 0 : i64, tpu.core_type = #tpu.core_type<tc>, window_params = [{transform_indices = @transform_0, window_bounds = array<i64: 8, 32>}, {transform_indices = @transform_1, window_bounds = array<i64: 8, 32>}, {transform_indices = @transform_2, window_bounds = array<i64: 1, 8, 128>}]} {
    %c0 = arith.constant 0 : index
    %c0_0 = arith.constant 0 : index
    %0 = vector.load %arg1[%c0, %c0_0] : memref<8x32xf32, #tpu.memory_space<vmem>>, vector<8x32xf32>
    %c0_1 = arith.constant 0 : index
    %c0_2 = arith.constant 0 : index
    %1 = vector.load %arg2[%c0_1, %c0_2] : memref<8x32xf32, #tpu.memory_space<vmem>>, vector<8x32xf32>
    %2 = tpu.iota {dimensions = array<i32: 1>} : vector<8x32xi32>
    %cst = arith.constant dense<0xFF800000> : vector<8xf32>
    %3 = vector.multi_reduction <maximumf>, %0, %cst [1] : vector<8x32xf32> to vector<8xf32>
    %4 = vector.shape_cast %3 : vector<8xf32> to vector<8x1xf32>
    %5 = vector.broadcast %4 : vector<8x1xf32> to vector<8x32xf32>
    %6 = arith.cmpf oeq, %0, %5 : vector<8x32xf32>
    %c32_i32 = arith.constant 32 : i32
    %7 = vector.broadcast %c32_i32 : i32 to vector<8x32xi32>
    %8 = arith.select %6, %2, %7 : vector<8x32xi1>, vector<8x32xi32>
    %cst_3 = arith.constant dense<2147483647> : vector<8xi32>
    %9 = vector.multi_reduction <minsi>, %8, %cst_3 [1] : vector<8x32xi32> to vector<8xi32>
    %10 = vector.shape_cast %9 : vector<8xi32> to vector<8x1xi32>
    %cst_4 = arith.constant dense<0xFF800000> : vector<8xf32>
    %11 = vector.multi_reduction <maximumf>, %1, %cst_4 [1] : vector<8x32xf32> to vector<8xf32>
    %12 = vector.shape_cast %11 : vector<8xf32> to vector<8x1xf32>
    %13 = vector.broadcast %12 : vector<8x1xf32> to vector<8x32xf32>
    %14 = arith.cmpf oeq, %1, %13 : vector<8x32xf32>
    %c32_i32_5 = arith.constant 32 : i32
    %15 = vector.broadcast %c32_i32_5 : i32 to vector<8x32xi32>
    %16 = arith.select %14, %2, %15 : vector<8x32xi1>, vector<8x32xi32>
    %cst_6 = arith.constant dense<2147483647> : vector<8xi32>
    %17 = vector.multi_reduction <minsi>, %16, %cst_6 [1] : vector<8x32xi32> to vector<8xi32>
    %18 = vector.shape_cast %17 : vector<8xi32> to vector<8x1xi32>
    %19 = tpu.iota {dimensions = array<i32: 0>} : vector<8x1xi32>
    %c8_i32 = arith.constant 8 : i32
    %20 = arith.muli %arg0, %c8_i32 : i32
    %21 = vector.broadcast %20 : i32 to vector<8x1xi32>
    %22 = arith.addi %21, %19 : vector<8x1xi32>
    %c8_i32_7 = arith.constant 8 : i32
    %23 = vector.broadcast %c8_i32_7 : i32 to vector<8x1xi32>
    %24 = arith.cmpi slt, %22, %23 : vector<8x1xi32>
    %25 = arith.cmpi eq, %10, %18 : vector<8x1xi32>
    %26 = arith.andi %24, %25 : vector<8x1xi1>
    %c1_i32 = arith.constant 1 : i32
    %c0_i32 = arith.constant 0 : i32
    %27 = vector.broadcast %c1_i32 : i32 to vector<8x1xi32>
    %28 = vector.broadcast %c0_i32 : i32 to vector<8x1xi32>
    %29 = arith.select %26, %27, %28 : vector<8x1xi1>, vector<8x1xi32>
    %30 = vector.shape_cast %29 : vector<8x1xi32> to vector<1x8x1xi32>
    %cst_8 = arith.constant dense<0> : vector<1xi32>
    %31 = vector.multi_reduction <add>, %30, %cst_8 [1, 2] : vector<1x8x1xi32> to vector<1xi32>
    %32 = vector.shape_cast %31 : vector<1xi32> to vector<1x1x1xi32>
    %33 = vector.extract %32[0, 0, 0] : i32 from vector<1x1x1xi32>
    %34 = vector.broadcast %33 : i32 to vector<1x8x128xi32>
    %c0_9 = arith.constant 0 : index
    %c0_10 = arith.constant 0 : index
    %c0_11 = arith.constant 0 : index
    %35 = vector.load %arg3[%c0_9, %c0_10, %c0_11] : memref<1x8x128xi32, #tpu.memory_space<vmem>>, vector<1x8x128xi32>
    tpu.vector_store %arg3[%c0_9, %c0_10, %c0_11], %34 {strides = array<i32>} : memref<1x8x128xi32, #tpu.memory_space<vmem>>, vector<1x8x128xi32>,
    return
  }
  func.func @transform_0(%arg0: i32) -> (i32, i32) {
    %c0_i32 = arith.constant 0 : i32
    %c0_i32_0 = arith.constant 0 : i32
    return %arg0, %c0_i32 : i32, i32
  }
  func.func @transform_1(%arg0: i32) -> (i32, i32) {
    %c0_i32 = arith.constant 0 : i32
    %c0_i32_0 = arith.constant 0 : i32
    return %arg0, %c0_i32 : i32, i32
  }
  func.func @transform_2(%arg0: i32) -> (i32, i32, i32) {
    %c0_i32 = arith.constant 0 : i32
    %c0_i32_0 = arith.constant 0 : i32
    %c0_i32_1 = arith.constant 0 : i32
    return %arg0, %c0_i32, %c0_i32_0 : i32, i32, i32
  }
}

</mosaic_0001>

<llo_original>
// kernel: tpu_custom_call.1
$region0: #{tpu_custom_call.1}
  #allocation0 [shape = 'u32[]', space=smem, size = 0x4, offset = 0x4, fixed_abs, tag = 'smem constant byte address 0x4 - core index']
  #allocation1 [shape = 'u32[144,128]{1,0:T(1,128)}', space=vmem, size = 0x12000, scoped, tag = 'internal scratch']
  %s0 = inlined_call_operand.hbm [shape: f32[8,32], index: 0, kind: input, shape index: {}]
  %s1 = inlined_call_operand.hbm [shape: f32[8,32], index: 1, kind: input, shape index: {}]
  %s2 = inlined_call_operand.hbm [shape: s32[1,8,128], index: 2, kind: output, shape index: {}]
  %s3 = sld [smem:[#allocation0]]
  $region26: #{tpu_custom_call.1} parent=0
    _
  %s5 = ssub.s32 1, %s3
  %s6 = scalar_select 0, %s5, %s3
  $region1: #{tpu_custom_call.1} parent=0
    #allocation2 [shape = 'u8[4096]{0}', space=vmem, size = 0x1000, scoped, tag = 'input window, operand 0, single buffered']
    #allocation3 [shape = 's32[1]{0}', space=sflag, size = 0x4, scoped, tag = 'scoped memory for tpu_custom_call.1']
    #allocation4 [shape = 's32[1]{0}', space=sflag, size = 0x4, scoped, tag = 'scoped memory for tpu_custom_call.1']
    #allocation5 [shape = 'u8[4096]{0}', space=vmem, size = 0x1000, scoped, tag = 'input window, operand 1, single buffered']
    #allocation6 [shape = 's32[1]{0}', space=sflag, size = 0x4, scoped, tag = 'scoped memory for tpu_custom_call.1']
    #allocation7 [shape = 'u8[4096]{0}', space=vmem, size = 0x1000, scoped, tag = 'output window, operand 0, single buffered']
    %7 = vsyncpa [#allocation3], 0
    %8 = vsyncpa [#allocation6], 0
    %9 = vsyncpa [#allocation4], 0
    // Predicated region
    $region2: #{tpu_custom_call.1} parent=1 // pred_check
      _
    $region3: #{tpu_custom_call.1} parent=1 // pred_check_branch
      %11 = sbr.rel (0) target = $region5
    $region4: #{tpu_custom_call.1} parent=1 // pred_region
      %s13 = ssub.s32 128, 128
      %14 = vsyncadd [#allocation3], %s13
      %s16 = sshll.u32 [#allocation2], 4
      %s17 = int_to_ptr.vmem [resolvable:$true] %s16
      %19 = dma.hbm_to_vmem [thread:$0]  %s0, 128, %s17, [#allocation3]
    $region5: #{tpu_custom_call.1} parent=1 // pred_fallthru
      _
    // Predicated region
    $region6: #{tpu_custom_call.1} parent=1 // pred_check
      _
    $region7: #{tpu_custom_call.1} parent=1 // pred_check_branch
      %21 = sbr.rel (0) target = $region9
    $region8: #{tpu_custom_call.1} parent=1 // pred_region
      %s23 = ssub.s32 128, 128
      %24 = vsyncadd [#allocation6], %s23
      %s26 = sshll.u32 [#allocation5], 4
      %s27 = int_to_ptr.vmem [resolvable:$true] %s26
      %29 = dma.hbm_to_vmem [thread:$0]  %s1, 128, %s27, [#allocation6]
    $region9: #{tpu_custom_call.1} parent=1 // pred_fallthru
      _
    // Predicated region
    $region10: #{tpu_custom_call.1} parent=1 // pred_check
      _
    $region11: #{tpu_custom_call.1} parent=1 // pred_check_branch
      %31 = sbr.rel (0) target = $region13
    $region12: #{tpu_custom_call.1} parent=1 // pred_region
      %32 = dma.done [#allocation3], 128
    $region13: #{tpu_custom_call.1} parent=1 // pred_fallthru
      _
    // Predicated region
    $region14: #{tpu_custom_call.1} parent=1 // pred_check
      _
    $region15: #{tpu_custom_call.1} parent=1 // pred_check_branch
      %34 = sbr.rel (0) target = $region17
    $region16: #{tpu_custom_call.1} parent=1 // pred_region
      %35 = dma.done [#allocation6], 128
    $region17: #{tpu_custom_call.1} parent=1 // pred_fallthru
      _
    %v36 = vld [vmem:[#allocation2] sm:$0xff]
    %v37 = vld [vmem:[#allocation5] sm:$0xff]
    %v38 = vlaneseq
    %v39 = vand.u32 %v38, 127
    %vm40 = vcmask 261120
    %v41 = vsel %vm40, %v36, -inf
    %42 = vmax.xlane.f32.xlu0 %v41
    %v43 = vpop.xlane.xlu0 %42
    %vm44 = vcmp.eq.f32.partialorder %v36, %v43
    %v45 = vsel %vm44, %v39, 32
    %v46 = vsel %vm40, %v45, 2147483647
    %v47 = vand.u32 %v46, 65535
    %v48 = vshra.s32 %v46, 16
    %v49 = vcvt.s32.f32 %v47
    %v50 = vcvt.s32.f32 %v48
    %51 = vmin.xlane.f32.xlu0 %v50
    %v52 = vpop.xlane.xlu0 %51
    %vm53 = vcmp.eq.f32.partialorder %v50, %v52
    %v54 = vsel %vm53, %v49, inf
    %55 = vmin.xlane.f32.xlu0 %v54
    %v56 = vpop.xlane.xlu0 %55
    %v57 = vcvt.f32.s32 %v56
    %v58 = vcvt.f32.s32 %v52
    %v59 = vshll.u32 %v58, 16
    %v60 = vadd.s32 %v59, %v57
    %v61 = vsel %vm40, %v37, -inf
    %62 = vmax.xlane.f32.xlu0 %v61
    %v63 = vpop.xlane.xlu0 %62
    %vm64 = vcmp.eq.f32.partialorder %v37, %v63
    %v65 = vsel %vm64, %v39, 32
    %v66 = vsel %vm40, %v65, 2147483647
    %v67 = vand.u32 %v66, 65535
    %v68 = vshra.s32 %v66, 16
    %v69 = vcvt.s32.f32 %v67
    %v70 = vcvt.s32.f32 %v68
    %71 = vmin.xlane.f32.xlu0 %v70
    %v72 = vpop.xlane.xlu0 %71
    %vm73 = vcmp.eq.f32.partialorder %v70, %v72
    %v74 = vsel %vm73, %v69, inf
    %75 = vmin.xlane.f32.xlu0 %v74
    %v76 = vpop.xlane.xlu0 %75
    %v77 = vcvt.f32.s32 %v76
    %v78 = vcvt.f32.s32 %v72
    %v79 = vshll.u32 %v78, 16
    %v80 = vadd.s32 %v79, %v77
    %v81 = vlaneseq
    %v82 = vshrl.u32 %v81, 7
    %s83 = smul.u32 0, 8
    %v84 = vstv %s83
    %v85 = vadd.s32 %v84, %v82
    %vm86 = vcmp.lt.s32.totalorder %v85, 8
    %vm87 = vcmp.eq.s32.totalorder %v60, %v80
    %vm88 = vmand %vm86, %vm87
    %v89 = vsel %vm88, 1, 0
    %v90 = vrot.slane %v89, 4
    %v91 = vadd.s32 %v89, %v90
    %v92 = vrot.slane %v91, 2
    %v93 = vadd.s32 %v91, %v92
    %v94 = vrot.slane %v93, 1
    %v95 = vadd.s32 %v93, %v94
    %s96 = vtos %v95
    %v97 = vstv %s96
    %98 = vst [vmem:[#allocation7] sm:$0xff] %v97
    // Predicated region
    $region18: #{tpu_custom_call.1} parent=1 // pred_check
      _
    $region19: #{tpu_custom_call.1} parent=1 // pred_check_branch
      %100 = sbr.rel (0) target = $region21
    $region20: #{tpu_custom_call.1} parent=1 // pred_region
      %s102 = ssub.s32 128, 128
      %103 = vsyncadd [#allocation4], %s102
      %s105 = sshll.u32 [#allocation7], 4
      %s106 = int_to_ptr.vmem [resolvable:$true] %s105
      %108 = dma.vmem_to_hbm [thread:$0]  %s106, 128, %s2, [#allocation4]
    $region21: #{tpu_custom_call.1} parent=1 // pred_fallthru
      _
    // Predicated region
    $region22: #{tpu_custom_call.1} parent=1 // pred_check
      _
    $region23: #{tpu_custom_call.1} parent=1 // pred_check_branch
      %110 = sbr.rel (0) target = $region25
    $region24: #{tpu_custom_call.1} parent=1 // pred_region
      %111 = dma.done [#allocation4], 128
    $region25: #{tpu_custom_call.1} parent=1 // pred_fallthru
      _
    %112 = vsyncpa [#allocation3], 1
    %113 = vsyncpa [#allocation6], 1
    %114 = vsyncpa [#allocation4], 1

</llo_original>
